<compile_context>
chip_gen: v6e
topology: v6e:2x2x1
jax: 0.10.0
libtpu: 0.0.40
codegen_flags: <defaults>
</compile_context>

<pallas_src>
import math
from functools import partial

import jax
import jax.numpy as jnp
from jax.experimental import pallas as pl
from jax.experimental.pallas import tpu as pltpu


def _arcface_kernel(cos_ref, out_ref, *, s_cos_m, s_sin_m):
    # Upcast once; compute in f32 (mandatory on v5e, harmless elsewhere).
    x = cos_ref[...].astype(jnp.float32)
    # sqrt of a negative is already NaN, matching acos's domain behavior.
    sin_theta = jnp.sqrt(1.0 - x * x)
    out_ref[...] = (x * s_cos_m - sin_theta * s_sin_m).astype(out_ref.dtype)


def _choose_tiles(B, N, itemsize, *, target_block_bytes=4 << 20, max_tile_b=256):
    """Pick (tile_b, tile_n) for a lane-dense, ~target_block_bytes block.

    tile_b: full B when small (full-extent dim is always legal), otherwise a
            sublane-unit multiple capped at max_tile_b.
    tile_n: a multiple of 128 (unmasked stores for all but a possible tail
            block), sized so tile_b * tile_n * itemsize ~= target_block_bytes.
    """
    sub_unit = 16 if itemsize == 2 else 8
    cap_b = max(sub_unit, (max_tile_b // sub_unit) * sub_unit)
    tile_b = B if B <= cap_b else cap_b

    budget_lanes = target_block_bytes // (tile_b * itemsize)
    budget_lanes = max(128, (budget_lanes // 128) * 128)
    if N <= 128:
        tile_n = N                      # full-extent dim is always legal
    else:
        tile_n = min(budget_lanes, (N // 128) * 128)
    return tile_b, tile_n


def arcface_forward(cosine, label=None, *, s=64.0, m=0.5,
                    tile_b=None, tile_n=None):
    """ArcFace forward. `label` is accepted for API parity but unused
    (matching the reference module, which never touches it)."""
    del label
    B, N = cosine.shape
    itemsize = jnp.dtype(cosine.dtype).itemsize

    auto_b, auto_n = _choose_tiles(B, N, itemsize)
    if tile_b is None:
        tile_b = auto_b
    if tile_n is None:
        tile_n = auto_n

    kernel = partial(
        _arcface_kernel,
        s_cos_m=float(s) * math.cos(float(m)),
        s_sin_m=float(s) * math.sin(float(m)),
    )

    grid = (pl.cdiv(B, tile_b), pl.cdiv(N, tile_n))

    return pl.pallas_call(
        kernel,
        out_shape=jax.ShapeDtypeStruct((B, N), cosine.dtype),
        grid_spec=pltpu.PrefetchScalarGridSpec(
            num_scalar_prefetch=0,
            grid=grid,
            in_specs=[pl.BlockSpec((tile_b, tile_n), lambda i, j: (i, j))],
            out_specs=pl.BlockSpec((tile_b, tile_n), lambda i, j: (i, j)),
        ),
        input_output_aliases={0: 0},
        cost_estimate=pl.CostEstimate(
            flops=5 * B * N,
            transcendentals=B * N,
            bytes_accessed=2 * B * N * itemsize,
        ),
        compiler_params=pltpu.CompilerParams(
            dimension_semantics=("parallel", "parallel"),
            vmem_limit_bytes=32 << 20,
        ),
    )(cosine)


if __name__ == "__main__":
    key = jax.random.PRNGKey(0)
    k_cos, k_lab = jax.random.split(key)

    s, m = 64.0, 0.5

    # Small shape consistent with the module: (batch, num_classes) cosines.
    batch, num_classes = 8, 256
    cosine = jax.random.uniform(
        k_cos, (batch, num_classes), jnp.float32, -1.0, 1.0
    )
    label = jax.random.randint(k_lab, (batch,), 0, num_classes)

    # Compute the reference *before* the (aliased) kernel call.
    ref = jnp.cos(jnp.arccos(cosine) + m) * s
    out = jax.block_until_ready(arcface_forward(cosine, label, s=s, m=m))
    assert jnp.allclose(out, ref, atol=1e-3, rtol=1e-4), "mismatch vs reference"

    # Uneven shape: exercises the partial tail blocks (non-128-multiple N,
    # non-8-multiple B) without any full-extent tile fallback.
    cos2 = jax.random.uniform(k_lab, (10, 300), jnp.float32, -1.0, 1.0)
    ref2 = jnp.cos(jnp.arccos(cos2) + m) * s
    out2 = jax.block_until_ready(arcface_forward(cos2, s=s, m=m))
    assert jnp.allclose(out2, ref2, atol=1e-3, rtol=1e-4), "mismatch (uneven shape)"

    print("KERNEL_OK")
</pallas_src>

<mosaic_0001>
module attributes {stable_mosaic.version = 11 : i64} {
  func.func @_arcface_kernel(%arg0: i32, %arg1: i32, %arg2: memref<8x256xf32, #tpu.memory_space<vmem>>, %arg3: memref<8x256xf32, #tpu.memory_space<vmem>>) attributes {dimension_semantics = [#tpu.dimension_semantics<parallel>, #tpu.dimension_semantics<parallel>], iteration_bounds = array<i64: 1, 1>, scalar_prefetch = 0 : i64, scratch_operands = 0 : i64, tpu.core_type = #tpu.core_type<tc>, window_params = [{transform_indices = @transform_0, window_bounds = array<i64: 8, 256>}, {transform_indices = @transform_1, window_bounds = array<i64: 8, 256>}]} {
    %c0 = arith.constant 0 : index
    %c0_0 = arith.constant 0 : index
    %0 = vector.load %arg2[%c0, %c0_0] : memref<8x256xf32, #tpu.memory_space<vmem>>, vector<8x256xf32>
    %1 = arith.mulf %0, %0 : vector<8x256xf32>
    %cst = arith.constant 1.000000e+00 : f32
    %2 = vector.broadcast %cst : f32 to vector<8x256xf32>
    %3 = arith.subf %2, %1 : vector<8x256xf32>
    %4 = math.sqrt %3 : vector<8x256xf32>
    %cst_1 = arith.constant 56.1652832 : f32
    %5 = vector.broadcast %cst_1 : f32 to vector<8x256xf32>
    %6 = arith.mulf %0, %5 : vector<8x256xf32>
    %cst_2 = arith.constant 30.6832352 : f32
    %7 = vector.broadcast %cst_2 : f32 to vector<8x256xf32>
    %8 = arith.mulf %4, %7 : vector<8x256xf32>
    %9 = arith.subf %6, %8 : vector<8x256xf32>
    %c0_3 = arith.constant 0 : index
    %c0_4 = arith.constant 0 : index
    %10 = vector.load %arg3[%c0_3, %c0_4] : memref<8x256xf32, #tpu.memory_space<vmem>>, vector<8x256xf32>
    tpu.vector_store %arg3[%c0_3, %c0_4], %9 {strides = array<i32>} : memref<8x256xf32, #tpu.memory_space<vmem>>, vector<8x256xf32>,
    return
  }
  func.func @transform_0(%arg0: i32, %arg1: i32) -> (i32, i32) {
    %c0_i32 = arith.constant 0 : i32
    return %arg0, %arg1 : i32, i32
  }
  func.func @transform_1(%arg0: i32, %arg1: i32) -> (i32, i32) {
    %c0_i32 = arith.constant 0 : i32
    return %arg0, %arg1 : i32, i32
  }
}

</mosaic_0001>

<llo_original>
// kernel: tpu_custom_call.1
$region0: #{tpu_custom_call.1}
  #allocation0 [shape = 'u32[]', space=smem, size = 0x4, offset = 0x4, fixed_abs, tag = 'smem constant byte address 0x4 - core index']
  #allocation1 [shape = 'u32[144,128]{1,0:T(1,128)}', space=vmem, size = 0x12000, scoped, tag = 'internal scratch']
  %s0 = inlined_call_operand.hbm [shape: f32[8,256], index: 0, kind: input, shape index: {}, may-alias: {0,1}]
  %s1 = inlined_call_operand.hbm [shape: f32[8,256], index: 1, kind: output, shape index: {}, may-alias: {0,1}]
  %s2 = sld [smem:[#allocation0]]
  $region18: #{tpu_custom_call.1} parent=0
    _
  %s4 = ssub.s32 1, %s2
  %s5 = scalar_select 0, %s4, %s2
  $region1: #{tpu_custom_call.1} parent=0
    #allocation2 [shape = 'u8[8192]{0}', space=vmem, size = 0x2000, scoped, tag = 'input window, operand 0, single buffered']
    #allocation3 [shape = 's32[1]{0}', space=sflag, size = 0x4, scoped, tag = 'scoped memory for tpu_custom_call.1']
    #allocation4 [shape = 's32[1]{0}', space=sflag, size = 0x4, scoped, tag = 'scoped memory for tpu_custom_call.1']
    #allocation5 [shape = 'u8[8192]{0}', space=vmem, size = 0x2000, scoped, tag = 'output window, operand 0, single buffered']
    %6 = vsyncpa [#allocation3], 0
    %7 = vsyncpa [#allocation4], 0
    // Predicated region
    $region2: #{tpu_custom_call.1} parent=1 // pred_check
      _
    $region3: #{tpu_custom_call.1} parent=1 // pred_check_branch
      %9 = sbr.rel (0) target = $region5
    $region4: #{tpu_custom_call.1} parent=1 // pred_region
      %s11 = ssub.s32 256, 256
      %12 = vsyncadd [#allocation3], %s11
      %s14 = sshll.u32 [#allocation2], 4
      %s15 = int_to_ptr.vmem [resolvable:$true] %s14
      %17 = dma.hbm_to_vmem [thread:$0]  %s0, 256, %s15, [#allocation3]
    $region5: #{tpu_custom_call.1} parent=1 // pred_fallthru
      _
    // Predicated region
    $region6: #{tpu_custom_call.1} parent=1 // pred_check
      _
    $region7: #{tpu_custom_call.1} parent=1 // pred_check_branch
      %19 = sbr.rel (0) target = $region9
    $region8: #{tpu_custom_call.1} parent=1 // pred_region
      %20 = dma.done [#allocation3], 256
    $region9: #{tpu_custom_call.1} parent=1 // pred_fallthru
      _
    %v21 = vld [vmem:[#allocation2] sm:$0xff]
    %v22 = vld [vmem:[#allocation2 + $0x8] sm:$0xff]
    %v23 = vmul.f32 %v21, %v21
    %v24 = vmul.f32 %v22, %v22
    %v25 = vsub.f32 1.0, %v23
    %v26 = vsub.f32 1.0, %v24
    %v27 = vrsqrt.pop %v25
    %v28 = vmul.f32 %v25, %v27
    %vm29 = vcmp.eq.f32.partialorder %v25, inf
    %v30 = vsel %vm29, %v25, %v28
    %vm31 = vcmp.eq.f32.partialorder %v25, 0.0
    %v32 = vand.u32 %v25, 2147483648
    %v33 = vsel %vm31, %v32, %v30
    %v34 = vrsqrt.pop %v26
    %v35 = vmul.f32 %v26, %v34
    %vm36 = vcmp.eq.f32.partialorder %v26, inf
    %v37 = vsel %vm36, %v26, %v35
    %vm38 = vcmp.eq.f32.partialorder %v26, 0.0
    %v39 = vand.u32 %v26, 2147483648
    %v40 = vsel %vm38, %v39, %v37
    %v41 = vmul.f32 %v21, 56.165283
    %v42 = vmul.f32 %v22, 56.165283
    %v43 = vmul.f32 %v33, 30.683235
    %v44 = vmul.f32 %v40, 30.683235
    %v45 = vsub.f32 %v41, %v43
    %v46 = vsub.f32 %v42, %v44
    %47 = vst [vmem:[#allocation5] sm:$0xff] %v45
    %48 = vst [vmem:[#allocation5 + $0x8] sm:$0xff] %v46
    // Predicated region
    $region10: #{tpu_custom_call.1} parent=1 // pred_check
      _
    $region11: #{tpu_custom_call.1} parent=1 // pred_check_branch
      %50 = sbr.rel (0) target = $region13
    $region12: #{tpu_custom_call.1} parent=1 // pred_region
      %s52 = ssub.s32 256, 256
      %53 = vsyncadd [#allocation4], %s52
      %s55 = sshll.u32 [#allocation5], 4
      %s56 = int_to_ptr.vmem [resolvable:$true] %s55
      %58 = dma.vmem_to_hbm [thread:$0]  %s56, 256, %s1, [#allocation4]
    $region13: #{tpu_custom_call.1} parent=1 // pred_fallthru
      _
    // Predicated region
    $region14: #{tpu_custom_call.1} parent=1 // pred_check
      _
    $region15: #{tpu_custom_call.1} parent=1 // pred_check_branch
      %60 = sbr.rel (0) target = $region17
    $region16: #{tpu_custom_call.1} parent=1 // pred_region
      %61 = dma.done [#allocation4], 256
    $region17: #{tpu_custom_call.1} parent=1 // pred_fallthru
      _
    %62 = vsyncpa [#allocation3], 1
    %63 = vsyncpa [#allocation4], 1

</llo_original>
